<compile_context>
chip_gen: v6e
topology: v6e:2x2x1
jax: 0.10.0
libtpu: 0.0.40
codegen_flags: <defaults>
</compile_context>

<pallas_src>
import math
import functools

import jax
import jax.numpy as jnp
from jax.experimental import pallas as pl
from jax.experimental.pallas import tpu as pltpu


# 48 MiB scoped VMEM: comfortably above the v5e 16 MiB default, below the
# v7x 64 MiB physical ceiling.
_VMEM_LIMIT = 48 * 1024 * 1024


# ----------------------------------------------------------------------------
# In-kernel helpers (fp32 math)
# ----------------------------------------------------------------------------
def _layernorm(v, gamma, beta, eps):
    mu = jnp.mean(v, axis=-1, keepdims=True)
    var = jnp.mean((v - mu) ** 2, axis=-1, keepdims=True)
    return (v - mu) * jax.lax.rsqrt(var + eps) * gamma + beta


def _gelu_exact(x):
    # F.gelu default: exact erf-based gelu
    return 0.5 * x * (1.0 + jax.lax.erf(x / math.sqrt(2.0)))


# ----------------------------------------------------------------------------
# Fused (optional LayerNorm) -> GEMM -> bias -> (optional GELU / residual)
# Activations in/out are bf16; MXU accumulates fp32; LN math fp32.
# ----------------------------------------------------------------------------
def _linear_kernel(*refs, has_ln, has_res, act, eps):
    idx = 0
    x_ref = refs[idx]; idx += 1
    if has_ln:
        g_ref = refs[idx]; bln_ref = refs[idx + 1]; idx += 2
    w_ref = refs[idx]; b_ref = refs[idx + 1]; idx += 2
    res_ref = None
    if has_res:
        res_ref = refs[idx]; idx += 1
    out_ref = refs[idx]

    x = x_ref[...]                                        # (TM, K) bf16
    if has_ln:
        x = _layernorm(x.astype(jnp.float32), g_ref[0], bln_ref[0],
                       eps).astype(jnp.bfloat16)
    y = jnp.dot(x, w_ref[...], preferred_element_type=jnp.float32)
    y = y + b_ref[0]
    if act == "gelu":
        y = _gelu_exact(y)
    if has_res:
        y = y + res_ref[...].astype(jnp.float32)
    out_ref[...] = y.astype(out_ref.dtype)


def fused_linear(x, w, b, *, gamma=None, beta=None, residual=None,
                 act=None, eps=1e-5, tm=512, tn=512):
    M, K = x.shape
    N = w.shape[1]
    tm = M if M < tm else tm
    tn = N if N < tn else tn
    m_tiles = pl.cdiv(M, tm)
    n_tiles = pl.cdiv(N, tn)

    has_ln = gamma is not None
    has_res = residual is not None

    # Pick the grid ordering that minimizes total HBM restreaming:
    #   N outer / M inner -> each (K, tn) weight tile DMA'd once, x restreamed
    #   M outer / N inner -> x DMA'd once, weight restreamed per row tile
    bytes_n_outer = n_tiles * (M * K) + K * N     # in bf16 elements (relative)
    bytes_m_outer = m_tiles * (K * N) + M * K
    if bytes_n_outer <= bytes_m_outer:
        grid = (n_tiles, m_tiles)                 # weight tile fetched once
        xmap = lambda j, i: (i, 0)
        gmap = lambda j, i: (0, 0)
        wmap = lambda j, i: (0, j)
        bmap = lambda j, i: (0, j)
        omap = lambda j, i: (i, j)
    else:
        grid = (m_tiles, n_tiles)                 # x row tile fetched once
        xmap = lambda i, j: (i, 0)
        gmap = lambda i, j: (0, 0)
        wmap = lambda i, j: (0, j)
        bmap = lambda i, j: (0, j)
        omap = lambda i, j: (i, j)

    in_specs = [pl.BlockSpec((tm, K), xmap)]                    # x rows (bf16)
    args = [x]
    if has_ln:
        in_specs += [pl.BlockSpec((1, K), gmap),                # gamma (fp32)
                     pl.BlockSpec((1, K), gmap)]                # beta  (fp32)
        args += [gamma, beta]
    in_specs += [pl.BlockSpec((K, tn), wmap),                   # weight (bf16)
                 pl.BlockSpec((1, tn), bmap)]                   # bias   (fp32)
    args += [w, b]
    if has_res:
        in_specs.append(pl.BlockSpec((tm, tn), omap))           # residual bf16
        args.append(residual)

    kernel = functools.partial(_linear_kernel, has_ln=has_ln,
                               has_res=has_res, act=act, eps=eps)
    return pl.pallas_call(
        kernel,
        out_shape=jax.ShapeDtypeStruct((M, N), jnp.bfloat16),
        grid=grid,
        in_specs=in_specs,
        out_specs=pl.BlockSpec((tm, tn), omap),
        compiler_params=pltpu.CompilerParams(
            dimension_semantics=("parallel", "parallel"),
            vmem_limit_bytes=_VMEM_LIMIT),
    )(*args)


# ----------------------------------------------------------------------------
# Causal attention kernel.
#  * Grid over batch only; the packed (1, S, 3H) qkv block is DMA'd once per
#    batch element and sliced per head in-kernel (no XLA head transposes).
#  * Causal mask generated in-kernel from two broadcasted_iota compares.
#  * Output assembled to a full-width (S, H) value and stored lane-dense
#    directly into the (B, S, H) bf16 layout the output projection consumes.
# ----------------------------------------------------------------------------
def _attention_kernel(qkv_ref, o_ref, *, num_heads, head_size, hidden, scale):
    qkv = qkv_ref[0]                                   # (S, 3H) bf16
    S = qkv.shape[0]
    q_idx = jax.lax.broadcasted_iota(jnp.int32, (S, S), 0)
    k_idx = jax.lax.broadcasted_iota(jnp.int32, (S, S), 1)
    future = k_idx > q_idx                             # mask: key after query

    head_outs = []
    for h in range(num_heads):                         # static unroll
        lo = h * head_size
        hi = lo + head_size
        q = qkv[:, lo:hi]                              # (S, hs) bf16
        k = qkv[:, hidden + lo:hidden + hi]
        v = qkv[:, 2 * hidden + lo:2 * hidden + hi]
        scores = jax.lax.dot_general(
            q, k, (((1,), (1,)), ((), ())),
            preferred_element_type=jnp.float32) * scale
        scores = jnp.where(future, jnp.float32(-10000.0), scores)
        m = jnp.max(scores, axis=-1, keepdims=True)
        p = jnp.exp(scores - m)
        p = p / jnp.sum(p, axis=-1, keepdims=True)     # exact softmax
        head_outs.append(jnp.dot(p.astype(jnp.bfloat16), v,
                                 preferred_element_type=jnp.float32))
    o_ref[0] = jnp.concatenate(head_outs, axis=-1).astype(o_ref.dtype)


def run_attention(qkv, *, num_heads, head_size, hidden):
    B, S, threeH = qkv.shape
    scale = 1.0 / math.sqrt(head_size)
    kernel = functools.partial(_attention_kernel, num_heads=num_heads,
                               head_size=head_size, hidden=hidden, scale=scale)
    return pl.pallas_call(
        kernel,
        out_shape=jax.ShapeDtypeStruct((B, S, hidden), jnp.bfloat16),
        grid=(B,),
        in_specs=[pl.BlockSpec((1, S, threeH), lambda b: (b, 0, 0))],
        out_specs=pl.BlockSpec((1, S, hidden), lambda b: (b, 0, 0)),
        compiler_params=pltpu.CompilerParams(
            dimension_semantics=("parallel",),
            vmem_limit_bytes=_VMEM_LIMIT),
    )(qkv)


# ----------------------------------------------------------------------------
# Final LayerNorm kernel (bf16 in/out, fp32 math), grid over row tiles.
# ----------------------------------------------------------------------------
def _layernorm_kernel(x_ref, g_ref, b_ref, o_ref, *, eps):
    o_ref[...] = _layernorm(x_ref[...].astype(jnp.float32),
                            g_ref[0], b_ref[0], eps).astype(o_ref.dtype)


def run_layernorm(x, gamma, beta, *, eps, tm=512):
    M, H = x.shape
    tm = M if M < tm else tm
    return pl.pallas_call(
        functools.partial(_layernorm_kernel, eps=eps),
        out_shape=jax.ShapeDtypeStruct((M, H), jnp.bfloat16),
        grid=(pl.cdiv(M, tm),),
        in_specs=[pl.BlockSpec((tm, H), lambda i: (i, 0)),
                  pl.BlockSpec((1, H), lambda i: (0, 0)),
                  pl.BlockSpec((1, H), lambda i: (0, 0))],
        out_specs=pl.BlockSpec((tm, H), lambda i: (i, 0)),
        compiler_params=pltpu.CompilerParams(
            dimension_semantics=("parallel",),
            vmem_limit_bytes=_VMEM_LIMIT),
    )(x, gamma, beta)


# ----------------------------------------------------------------------------
# Vocab projection: logits = enc @ wte^T   ('nl, vl -> nv')
# enc stays fully VMEM-resident (bf16); wte streams exactly once over the
# vocab-tile grid; fp32 logits for fidelity with the reference.
# ----------------------------------------------------------------------------
def _vocab_proj_kernel(enc_ref, wte_ref, o_ref):
    o_ref[...] = jax.lax.dot_general(
        enc_ref[...], wte_ref[...],
        (((1,), (1,)), ((), ())),
        preferred_element_type=jnp.float32)


def run_vocab_proj(enc, wte_bf16, *, tv=256):
    M, H = enc.shape
    V = wte_bf16.shape[0]
    tv = V if V < tv else tv
    return pl.pallas_call(
        _vocab_proj_kernel,
        out_shape=jax.ShapeDtypeStruct((M, V), jnp.float32),
        grid=(pl.cdiv(V, tv),),
        in_specs=[pl.BlockSpec((M, H), lambda j: (0, 0)),    # resident enc
                  pl.BlockSpec((tv, H), lambda j: (j, 0))],  # streamed wte
        out_specs=pl.BlockSpec((M, tv), lambda j: (0, j)),
        compiler_params=pltpu.CompilerParams(
            dimension_semantics=("parallel",),
            vmem_limit_bytes=_VMEM_LIMIT),
    )(enc, wte_bf16)


# ----------------------------------------------------------------------------
# One transformer block (glue around the kernels above; no transposes)
# ----------------------------------------------------------------------------
def run_gpt2_block(x2d, B, S, layer, *, num_heads, head_size, eps):
    H = x2d.shape[1]

    # --- attention sub-block:  x = x + attn(ln1(x)) ---
    qkv = fused_linear(x2d, layer["wqkv"], layer["bqkv"],
                       gamma=layer["ln1_g"], beta=layer["ln1_b"], eps=eps)
    qkv = qkv.reshape(B, S, 3 * H)                       # free reshape
    attn = run_attention(qkv, num_heads=num_heads,
                         head_size=head_size, hidden=H)  # (B, S, H) bf16
    attn2d = attn.reshape(B * S, H)                      # free reshape
    x2d = fused_linear(attn2d, layer["wo"], layer["bo"], residual=x2d)

    # --- MLP sub-block:  x = x + linear2(gelu(linear1(ln2(x)))) ---
    h = fused_linear(x2d, layer["w1"], layer["b1"],
                     gamma=layer["ln2_g"], beta=layer["ln2_b"],
                     act="gelu", eps=eps)
    x2d = fused_linear(h, layer["w2"], layer["b2"], residual=x2d)
    return x2d


# ----------------------------------------------------------------------------
# Parameter init + full forward
# ----------------------------------------------------------------------------
def init_gpt2_params(key, *, num_layers, num_heads, vocab_size, hidden_size,
                     max_position_embeddings):
    inter = 4 * hidden_size
    keys = jax.random.split(key, 2 + num_layers)
    wte = 0.02 * jax.random.normal(keys[0], (vocab_size, hidden_size),
                                   jnp.float32)
    p = {
        "wte": wte,                                   # fp32 for embedding gather
        "wte_bf16": wte.astype(jnp.bfloat16),         # bf16 for vocab projection
        "wpe": 0.02 * jax.random.normal(keys[1], (max_position_embeddings,
                                                  hidden_size), jnp.float32),
        "lnf_g": jnp.ones((1, hidden_size), jnp.float32),
        "lnf_b": jnp.zeros((1, hidden_size), jnp.float32),
        "blocks": [],
    }
    for i in range(num_layers):
        k0, k1, k2, k3 = jax.random.split(keys[2 + i], 4)
        blk = {
            "ln1_g": jnp.ones((1, hidden_size), jnp.float32),
            "ln1_b": jnp.zeros((1, hidden_size), jnp.float32),
            # matmul weights stored [in, out] in bf16 (halved HBM traffic,
            # MXU-native dtype); accumulation stays fp32 in-kernel.
            "wqkv": (0.02 * jax.random.normal(k0, (hidden_size, 3 * hidden_size),
                                              jnp.float32)).astype(jnp.bfloat16),
            "bqkv": jnp.zeros((1, 3 * hidden_size), jnp.float32),
            "wo": (0.02 * jax.random.normal(k1, (hidden_size, hidden_size),
                                            jnp.float32)).astype(jnp.bfloat16),
            "bo": jnp.zeros((1, hidden_size), jnp.float32),
            "ln2_g": jnp.ones((1, hidden_size), jnp.float32),
            "ln2_b": jnp.zeros((1, hidden_size), jnp.float32),
            "w1": (0.02 * jax.random.normal(k2, (hidden_size, inter),
                                            jnp.float32)).astype(jnp.bfloat16),
            "b1": jnp.zeros((1, inter), jnp.float32),
            "w2": (0.02 * jax.random.normal(k3, (inter, hidden_size),
                                            jnp.float32)).astype(jnp.bfloat16),
            "b2": jnp.zeros((1, hidden_size), jnp.float32),
        }
        p["blocks"].append(blk)
    return p


def gpt2_forward(params, input_ids, *, num_heads, eps):
    B, S = input_ids.shape
    H = params["wte"].shape[1]
    head_size = H // num_heads

    # glue: embedding gathers (token + position); dropout = identity in eval
    enc = params["wte"][input_ids] + params["wpe"][:S][None, :, :]
    x2d = enc.astype(jnp.bfloat16).reshape(B * S, H)     # bf16 activations

    for layer in params["blocks"]:
        x2d = run_gpt2_block(x2d, B, S, layer, num_heads=num_heads,
                             head_size=head_size, eps=eps)

    enc_ln = run_layernorm(x2d, params["lnf_g"], params["lnf_b"], eps=eps)
    logits = run_vocab_proj(enc_ln, params["wte_bf16"]).reshape(B, S, -1)
    final_encoding = enc_ln.astype(jnp.float32).reshape(B, S, H)
    return logits, final_encoding


# ----------------------------------------------------------------------------
if __name__ == "__main__":
    num_layers = 2
    num_heads = 4
    vocab_size = 64
    hidden_size = 32
    max_position_embeddings = 16
    layer_norm_epsilon = 1e-5
    batch, seq = 2, 8

    key = jax.random.PRNGKey(0)
    pkey, ikey = jax.random.split(key)
    params = init_gpt2_params(
        pkey,
        num_layers=num_layers,
        num_heads=num_heads,
        vocab_size=vocab_size,
        hidden_size=hidden_size,
        max_position_embeddings=max_position_embeddings,
    )
    input_ids = jax.random.randint(ikey, (batch, seq), 0, vocab_size,
                                   dtype=jnp.int32)

    logits, final_encoding = gpt2_forward(
        params, input_ids, num_heads=num_heads, eps=layer_norm_epsilon)
    jax.block_until_ready((logits, final_encoding))

    assert logits.shape == (batch, seq, vocab_size)
    assert final_encoding.shape == (batch, seq, hidden_size)
    assert bool(jnp.all(jnp.isfinite(logits)))
    assert bool(jnp.all(jnp.isfinite(final_encoding)))
    print("KERNEL_OK")
</pallas_src>

<mosaic_0001>
module attributes {stable_mosaic.version = 11 : i64} {
  func.func @_linear_kernel(%arg0: i32, %arg1: i32, %arg2: memref<16x32xbf16, #tpu.memory_space<vmem>>, %arg3: memref<1x32xf32, #tpu.memory_space<vmem>>, %arg4: memref<1x32xf32, #tpu.memory_space<vmem>>, %arg5: memref<32x96xbf16, #tpu.memory_space<vmem>>, %arg6: memref<1x96xf32, #tpu.memory_space<vmem>>, %arg7: memref<16x96xbf16, #tpu.memory_space<vmem>>) attributes {dimension_semantics = [#tpu.dimension_semantics<parallel>, #tpu.dimension_semantics<parallel>], iteration_bounds = array<i64: 1, 1>, scalar_prefetch = 0 : i64, scratch_operands = 0 : i64, tpu.core_type = #tpu.core_type<tc>, window_params = [{transform_indices = @transform_0, window_bounds = array<i64: 16, 32>}, {pipeline_mode = #tpu.pipeline_mode<synchronous>, transform_indices = @transform_1, window_bounds = array<i64: 1, 32>}, {pipeline_mode = #tpu.pipeline_mode<synchronous>, transform_indices = @transform_2, window_bounds = array<i64: 1, 32>}, {transform_indices = @transform_3, window_bounds = array<i64: 32, 96>}, {transform_indices = @transform_4, window_bounds = array<i64: 1, 96>}, {transform_indices = @transform_5, window_bounds = array<i64: 16, 96>}]} {
    %c0 = arith.constant 0 : index
    %c0_0 = arith.constant 0 : index
    %0 = vector.load %arg2[%c0, %c0_0] : memref<16x32xbf16, #tpu.memory_space<vmem>>, vector<16x32xbf16>
    %1 = arith.extf %0 : vector<16x32xbf16> to vector<16x32xf32>
    %c0_1 = arith.constant 0 : index
    %c0_2 = arith.constant 0 : index
    %2 = vector.load %arg3[%c0_1, %c0_2] : memref<1x32xf32, #tpu.memory_space<vmem>>, vector<1x32xf32>
    %3 = vector.shape_cast %2 : vector<1x32xf32> to vector<32xf32>
    %c0_3 = arith.constant 0 : index
    %c0_4 = arith.constant 0 : index
    %4 = vector.load %arg4[%c0_3, %c0_4] : memref<1x32xf32, #tpu.memory_space<vmem>>, vector<1x32xf32>
    %5 = vector.shape_cast %4 : vector<1x32xf32> to vector<32xf32>
    %cst = arith.constant dense<0.000000e+00> : vector<16xf32>
    %6 = vector.multi_reduction <add>, %1, %cst [1] : vector<16x32xf32> to vector<16xf32>
    %7 = vector.shape_cast %6 : vector<16xf32> to vector<16x1xf32>
    %cst_5 = arith.constant 3.200000e+01 : f32
    %8 = vector.broadcast %cst_5 : f32 to vector<16x1xf32>
    %9 = arith.divf %7, %8 : vector<16x1xf32>
    %10 = vector.broadcast %9 : vector<16x1xf32> to vector<16x32xf32>
    %11 = arith.subf %1, %10 : vector<16x32xf32>
    %12 = arith.mulf %11, %11 : vector<16x32xf32>
    %cst_6 = arith.constant dense<0.000000e+00> : vector<16xf32>
    %13 = vector.multi_reduction <add>, %12, %cst_6 [1] : vector<16x32xf32> to vector<16xf32>
    %14 = vector.shape_cast %13 : vector<16xf32> to vector<16x1xf32>
    %cst_7 = arith.constant 3.200000e+01 : f32
    %15 = vector.broadcast %cst_7 : f32 to vector<16x1xf32>
    %16 = arith.divf %14, %15 : vector<16x1xf32>
    %17 = vector.broadcast %9 : vector<16x1xf32> to vector<16x32xf32>
    %18 = arith.subf %1, %17 : vector<16x32xf32>
    %cst_8 = arith.constant 9.99999974E-6 : f32
    %19 = vector.broadcast %cst_8 : f32 to vector<16x1xf32>
    %20 = arith.addf %16, %19 : vector<16x1xf32>
    %21 = math.rsqrt %20 : vector<16x1xf32>
    %22 = vector.broadcast %21 : vector<16x1xf32> to vector<16x32xf32>
    %23 = arith.mulf %18, %22 : vector<16x32xf32>
    %24 = vector.shape_cast %3 : vector<32xf32> to vector<1x32xf32>
    %25 = vector.broadcast %24 : vector<1x32xf32> to vector<16x32xf32>
    %26 = arith.mulf %23, %25 : vector<16x32xf32>
    %27 = vector.shape_cast %5 : vector<32xf32> to vector<1x32xf32>
    %28 = vector.broadcast %27 : vector<1x32xf32> to vector<16x32xf32>
    %29 = arith.addf %26, %28 : vector<16x32xf32>
    %30 = arith.truncf %29 : vector<16x32xf32> to vector<16x32xbf16>
    %c0_9 = arith.constant 0 : index
    %c0_10 = arith.constant 0 : index
    %31 = vector.load %arg5[%c0_9, %c0_10] : memref<32x96xbf16, #tpu.memory_space<vmem>>, vector<32x96xbf16>
    %cst_11 = arith.constant dense<0.000000e+00> : vector<16x96xf32>
    %32 = tpu.matmul %30, %31, %cst_11 {dimension_numbers = #tpu.dot_dimension_numbers<[1], [0], [0], [1], [0, 0, 1, 1], [], []>} : vector<16x32xbf16>, vector<32x96xbf16>, vector<16x96xf32> -> vector<16x96xf32>
    %c0_12 = arith.constant 0 : index
    %c0_13 = arith.constant 0 : index
    %33 = vector.load %arg6[%c0_12, %c0_13] : memref<1x96xf32, #tpu.memory_space<vmem>>, vector<1x96xf32>
    %34 = vector.shape_cast %33 : vector<1x96xf32> to vector<96xf32>
    %35 = vector.shape_cast %34 : vector<96xf32> to vector<1x96xf32>
    %36 = vector.broadcast %35 : vector<1x96xf32> to vector<16x96xf32>
    %37 = arith.addf %32, %36 : vector<16x96xf32>
    %38 = arith.truncf %37 : vector<16x96xf32> to vector<16x96xbf16>
    %c0_14 = arith.constant 0 : index
    %c0_15 = arith.constant 0 : index
    %39 = vector.load %arg7[%c0_14, %c0_15] : memref<16x96xbf16, #tpu.memory_space<vmem>>, vector<16x96xbf16>
    tpu.vector_store %arg7[%c0_14, %c0_15], %38 {strides = array<i32>} : memref<16x96xbf16, #tpu.memory_space<vmem>>, vector<16x96xbf16>,
    return
  }
  func.func @transform_0(%arg0: i32, %arg1: i32) -> (i32, i32) {
    %c0_i32 = arith.constant 0 : i32
    %c0_i32_0 = arith.constant 0 : i32
    return %arg1, %c0_i32 : i32, i32
  }
  func.func @transform_1(%arg0: i32, %arg1: i32) -> (i32, i32) {
    %c0_i32 = arith.constant 0 : i32
    %c0_i32_0 = arith.constant 0 : i32
    %c0_i32_1 = arith.constant 0 : i32
    return %c0_i32, %c0_i32_0 : i32, i32
  }
  func.func @transform_2(%arg0: i32, %arg1: i32) -> (i32, i32) {
    %c0_i32 = arith.constant 0 : i32
    %c0_i32_0 = arith.constant 0 : i32
    %c0_i32_1 = arith.constant 0 : i32
    return %c0_i32, %c0_i32_0 : i32, i32
  }
  func.func @transform_3(%arg0: i32, %arg1: i32) -> (i32, i32) {
    %c0_i32 = arith.constant 0 : i32
    %c0_i32_0 = arith.constant 0 : i32
    return %c0_i32, %arg0 : i32, i32
  }
  func.func @transform_4(%arg0: i32, %arg1: i32) -> (i32, i32) {
    %c0_i32 = arith.constant 0 : i32
    %c0_i32_0 = arith.constant 0 : i32
    return %c0_i32, %arg0 : i32, i32
  }
  func.func @transform_5(%arg0: i32, %arg1: i32) -> (i32, i32) {
    %c0_i32 = arith.constant 0 : i32
    return %arg1, %arg0 : i32, i32
  }
}

</mosaic_0001>

<llo_original>
// kernel: tpu_custom_call.1
$region0: #{tpu_custom_call.1}
  #allocation0 [shape = 'u32[]', space=smem, size = 0x4, offset = 0x4, fixed_abs, tag = 'smem constant byte address 0x4 - core index']
  #allocation1 [shape = 'u32[144,128]{1,0:T(1,128)}', space=vmem, size = 0x12000, scoped, tag = 'internal scratch']
  %s0 = inlined_call_operand.hbm [shape: bf16[16,32], index: 0, kind: input, shape index: {}]
  %s1 = inlined_call_operand.vmem [shape: f32[1,32], index: 1, kind: input, shape index: {}]
  %s2 = inlined_call_operand.vmem [shape: f32[1,32], index: 2, kind: input, shape index: {}]
  %s3 = inlined_call_operand.hbm [shape: bf16[32,96], index: 3, kind: input, shape index: {}]
  %s4 = inlined_call_operand.vmem [shape: f32[1,96], index: 4, kind: input, shape index: {}]
  %s5 = inlined_call_operand.hbm [shape: bf16[16,96], index: 5, kind: output, shape index: {}]
  %s6 = sld [smem:[#allocation0]]
  $region38: #{tpu_custom_call.1} parent=0
    _
  %s8 = ssub.s32 1, %s6
  %s9 = scalar_select 0, %s8, %s6
  $region1: #{tpu_custom_call.1} parent=0
    #allocation2 [shape = 'u8[4096]{0}', space=vmem, size = 0x1000, scoped, tag = 'input window, operand 0, single buffered']
    #allocation3 [shape = 's32[1]{0}', space=sflag, size = 0x4, scoped, tag = 'scoped memory for tpu_custom_call.1']
    #allocation4 [shape = 's32[1]{0}', space=sflag, size = 0x4, scoped, tag = 'scoped memory for tpu_custom_call.1']
    #allocation5 [shape = 'u8[8192]{0}', space=vmem, size = 0x2000, scoped, tag = 'input window, operand 3, single buffered']
    #allocation6 [shape = 's32[1]{0}', space=sflag, size = 0x4, scoped, tag = 'scoped memory for tpu_custom_call.1']
    #allocation7 [shape = 'u8[4096]{0}', space=vmem, size = 0x1000, scoped, tag = 'output window, operand 0, single buffered']
    %10 = vsyncpa [#allocation3], 0
    %11 = vsyncpa [#allocation6], 0
    %12 = vsyncpa [#allocation4], 0
    // Predicated region
    $region2: #{tpu_custom_call.1} parent=1 // pred_check
      _
    $region3: #{tpu_custom_call.1} parent=1 // pred_check_branch
      %14 = sbr.rel (0) target = $region5
    $region4: #{tpu_custom_call.1} parent=1 // pred_region
      %s16 = ssub.s32 128, 128
      %17 = vsyncadd [#allocation3], %s16
      %s18 = sshll.u32 [#allocation2], 4
      %s19 = int_to_ptr.vmem [resolvable:$true] %s18
      %24 = dma.hbm_to_vmem [thread:$0]  %s0, 128, %s19, [#allocation3], 64, 64, 4
    $region5: #{tpu_custom_call.1} parent=1 // pred_fallthru
      _
    // Predicated region
    $region6: #{tpu_custom_call.1} parent=1 // pred_check
      _
    $region7: #{tpu_custom_call.1} parent=1 // pred_check_branch
      %26 = sbr.rel (0) target = $region9
    $region8: #{tpu_custom_call.1} parent=1 // pred_region
      _
    $region9: #{tpu_custom_call.1} parent=1 // pred_fallthru
      _
    // Predicated region
    $region10: #{tpu_custom_call.1} parent=1 // pred_check
      _
    $region11: #{tpu_custom_call.1} parent=1 // pred_check_branch
      %28 = sbr.rel (0) target = $region13
    $region12: #{tpu_custom_call.1} parent=1 // pred_region
      _
    $region13: #{tpu_custom_call.1} parent=1 // pred_fallthru
      _
    // Predicated region
    $region14: #{tpu_custom_call.1} parent=1 // pred_check
      _
    $region15: #{tpu_custom_call.1} parent=1 // pred_check_branch
      %30 = sbr.rel (0) target = $region17
    $region16: #{tpu_custom_call.1} parent=1 // pred_region
      %s32 = ssub.s32 256, 256
      %33 = vsyncadd [#allocation6], %s32
      %s34 = sshll.u32 [#allocation5], 4
      %s35 = int_to_ptr.vmem [resolvable:$true] %s34
      %40 = dma.hbm_to_vmem [thread:$0]  %s3, 256, %s35, [#allocation6], 64, 64, 4
    $region17: #{tpu_custom_call.1} parent=1 // pred_fallthru
      _
    // Predicated region
    $region18: #{tpu_custom_call.1} parent=1 // pred_check
      _
    $region19: #{tpu_custom_call.1} parent=1 // pred_check_branch
      %42 = sbr.rel (0) target = $region21
    $region20: #{tpu_custom_call.1} parent=1 // pred_region
      _
    $region21: #{tpu_custom_call.1} parent=1 // pred_fallthru
      _
    // Predicated region
    $region22: #{tpu_custom_call.1} parent=1 // pred_check
      _
    $region23: #{tpu_custom_call.1} parent=1 // pred_check_branch
      %44 = sbr.rel (0) target = $region25
    $region24: #{tpu_custom_call.1} parent=1 // pred_region
      %45 = dma.done [#allocation3], 128
    $region25: #{tpu_custom_call.1} parent=1 // pred_fallthru
      _
    // Predicated region
    $region26: #{tpu_custom_call.1} parent=1 // pred_check
      _
    $region27: #{tpu_custom_call.1} parent=1 // pred_check_branch
      %47 = sbr.rel (0) target = $region29
    $region28: #{tpu_custom_call.1} parent=1 // pred_region
      %48 = dma.done [#allocation6], 256
    $region29: #{tpu_custom_call.1} parent=1 // pred_fallthru
      _
    %v50 = vld [vmem:[#allocation2] sm:$0xf]
    %v51 = vld [vmem:[#allocation2 + $0x4] sm:$0xf]
    %v52 = vunpack.c.l.bf16 %v50
    %v53 = vunpack.c.l.bf16 %v51
    %v54 = vld [vmem:[%s1] sm:$0x1]
    %v55 = vld [vmem:[%s2] sm:$0x1]
    %vm56 = vcmask 261120
    %v57 = vsel %vm56, %v52, 0.0
    %58 = vadd.xlane.f32.xlu0 %v57
    %v59 = vpop.xlane.xlu0 %58
    %v60 = vsel %vm56, %v53, 0.0
    %61 = vadd.xlane.f32.xlu0 %v60
    %v62 = vpop.xlane.xlu0 %61
    %v63 = vrcp.pop 32.0
    %v64 = vmul.f32 %v59, %v63
    %v65 = vmul.f32 %v62, %v63
    %v66 = vsub.f32 %v52, %v64
    %v67 = vsub.f32 %v53, %v65
    %v68 = vmul.f32 %v66, %v66
    %v69 = vmul.f32 %v67, %v67
    %v70 = vsel %vm56, %v68, 0.0
    %71 = vadd.xlane.f32.xlu0 %v70
    %v72 = vpop.xlane.xlu0 %71
    %v73 = vsel %vm56, %v69, 0.0
    %74 = vadd.xlane.f32.xlu0 %v73
    %v75 = vpop.xlane.xlu0 %74
    %v76 = vmul.f32 %v72, %v63
    %v77 = vmul.f32 %v75, %v63
    %v78 = vadd.f32 %v76, 1e-05
    %v79 = vadd.f32 %v77, 1e-05
    %v80 = vrsqrt.pop %v78
    %v81 = vrsqrt.pop %v79
    %v82 = vmul.f32 %v66, %v80
    %v83 = vmul.f32 %v67, %v81
    %v85 = vlaneseq
    %v86 = vshrl.u32 %v85, 7
    %v87 = vsub.s32 0, %v86
    %v88 = vrot.slane %v54, %v87
    %v90 = vmul.f32 %v82, %v88
    %v91 = vmul.f32 %v83, %v88
    %v93 = vlaneseq
    %v94 = vshrl.u32 %v93, 7
    %v95 = vsub.s32 0, %v94
    %v96 = vrot.slane %v55, %v95
    %v98 = vadd.f32 %v90, %v96
    %v99 = vadd.f32 %v91, %v96
    %v100 = vpack.c.bf16 %v99, %v98
    %v101 = vld [vmem:[#allocation5] sm:$0xf]
    %v102 = vld [vmem:[#allocation5 + $0x4] sm:$0xf]
    %v103 = vld [vmem:[#allocation5 + $0x8] sm:$0xf]
    %v104 = vld [vmem:[#allocation5 + $0xc] sm:$0xf]
    %v105 = vld [vmem:[%s4] sm:$0x1]
    %v107 = vlaneseq
    %v108 = vshrl.u32 %v107, 7
    %v109 = vsub.s32 0, %v108
    %v110 = vrot.slane %v105, %v109
    %v116 = vunpack.c.l.b16 %v101
    %v117 = vunpack.c.l.b16 %v102
    %v118 = vunpack.c.l.b16 %v103
    %v119 = vunpack.c.l.b16 %v104
    %v120 = vpack.c.b16 %v117, %v116
    %v121 = vpack.c.b16 %v119, %v118
    %v125 = vsel %vm56, %v100, 0
    %127 = vmatprep.subr.bf16.mxu0 0
    %128 = vmatpush1.bf16.msra.mxu0 0
    %129 = vmatprep.subr.bf16.mxu0 0
    %130 = vmatpush1.bf16.msra.mxu0 0
    %131 = vmatprep.subr.bf16.mxu0 0
    %132 = vmatpush1.bf16.msra.mxu0 0
    %133 = vmatprep.subr.bf16.mxu0 0
    %134 = vmatpush1.bf16.msra.mxu0 0
    %135 = vmatprep.subr.bf16.mxu0 0
    %136 = vmatpush1.bf16.msra.mxu0 0
    %137 = vmatprep.subr.bf16.mxu0 0
    %138 = vmatpush1.bf16.msra.mxu0 0
    %139 = vmatprep.subr.bf16.mxu0 0
    %140 = vmatpush1.bf16.msra.mxu0 %v121
    %141 = vmatprep.subr.bf16.mxu0 0
    %142 = vmatpush1.bf16.msra.mxu0 %v120
    %143 = vmatprep.subr.bf16.mxu0 0
    %144 = vmatpush2.bf16.msra.mxu0 0
    %145 = vmatprep.subr.bf16.mxu0 0
    %146 = vmatpush2.bf16.msra.mxu0 0
    %147 = vmatprep.subr.bf16.mxu0 0
    %148 = vmatpush2.bf16.msra.mxu0 0
    %149 = vmatprep.subr.bf16.mxu0 0
    %150 = vmatpush2.bf16.msra.mxu0 0
    %151 = vmatprep.subr.bf16.mxu0 0
    %152 = vmatpush2.bf16.msra.mxu0 0
    %153 = vmatprep.subr.bf16.mxu0 0
    %154 = vmatpush2.bf16.msra.mxu0 0
    %155 = vmatprep.subr.bf16.mxu0 0
    %156 = vmatpush2.bf16.msra.mxu0 0
    %157 = vmatprep.subr.bf16.mxu0 0
    %158 = vmatpush2.bf16.msra.mxu0 0
    %159 = vmatprep.mubr.bf16.mxu0 0
    %160 = vmatmul.mubr.bf16.gmra.mxu0 %v125
    %v161 = vpop.f32.mrf.mxu0
    %v162 = vadd.f32 %v110, %v161
    %v163 = vpop.f32.mrf.mxu0
    %v164 = vpop.f32.mrf.mxu0
    %v165 = vadd.f32 %v110, %v164
    %v166 = vpop.f32.mrf.mxu0
    %167 = vdwg.mxu0
    %v168 = vpack.c.bf16 %v165, %v162
    %v170 = vunpack.c.l.b16 %v168
    %v171 = vunpack.c.h.b16 %v168
    %v172 = vpack.c.b16 %v170, %v170
    %v173 = vpack.c.b16 %v171, %v171
    %vm176 = vcmask 781312
    %177 = vst.msk [vmem:[#allocation7] sm:$0xf] %vm176, %v172
    %178 = vst.msk [vmem:[#allocation7 + $0x4] sm:$0xf] %vm176, %v173
    // Predicated region
    $region30: #{tpu_custom_call.1} parent=1 // pred_check
      _
    $region31: #{tpu_custom_call.1} parent=1 // pred_check_branch
      %180 = sbr.rel (0) target = $region33
    $region32: #{tpu_custom_call.1} parent=1 // pred_region
      %s182 = ssub.s32 128, 128
      %183 = vsyncadd [#allocation4], %s182
      %s184 = sshll.u32 [#allocation7], 4
      %s185 = int_to_ptr.vmem [resolvable:$true] %s184
      %190 = dma.vmem_to_hbm [thread:$0]  %s185, 128, %s5, [#allocation4], 64, 64, 4
    $region33: #{tpu_custom_call.1} parent=1 // pred_fallthru
      _
    // Predicated region
    $region34: #{tpu_custom_call.1} parent=1 // pred_check
      _
    $region35: #{tpu_custom_call.1} parent=1 // pred_check_branch
      %192 = sbr.rel (0) target = $region37
    $region36: #{tpu_custom_call.1} parent=1 // pred_region
      %193 = dma.done [#allocation4], 128
    $region37: #{tpu_custom_call.1} parent=1 // pred_fallthru
      _
    %194 = vsyncpa [#allocation3], 1
    %195 = vsyncpa [#allocation6], 1
    %196 = vsyncpa [#allocation4], 1

</llo_original>
